<compile_context>
chip_gen: v5e
topology: v5e:2x2
jax: 0.10.0
libtpu: 0.0.40
codegen_flags: <defaults>
</compile_context>

<pallas_src>
import functools

import jax
import jax.numpy as jnp
from jax.experimental import pallas as pl
from jax.experimental.pallas import tpu as pltpu

CH = 16                     # channel width of the Foo module
_HIGHEST = jax.lax.Precision.HIGHEST   # only used for tiny pack-time folds / reference


# --------------------------- fused kernel ---------------------------

def _fused_foo_kernel(*refs, nlayers, t, multi):
    """One fused forward pass for a single (batch, L-tile) grid cell.

    refs (multi-tile):  xm_ref (1,1,t), xh_ref (1,1,128),  w1, b1, [w144_i, b_i]..., o_ref
    refs (single-tile): xm_ref (1,1,t+halo),               w1, b1, [w144_i, b_i]..., o_ref

      w1   : (3, CH, 1)  f32  pre_conv folded into layer-1 taps
      b1   : (CH, 1)     f32
      w144 : (CH, 9*CH)  bf16 = [w_hi | w_hi | w_lo] tap-concatenated weights
      b_i  : (CH, 1)     f32
      o_ref: (1, CH, t)  f32  lane-dense output tile
    """
    halo = 2 * nlayers
    if multi:
        xm_ref, xh_ref, w1_ref, b1_ref, *rest = refs
        # Stitch the 6-sample halo (first lanes of the next 128-block) onto the tile.
        x_row = jnp.concatenate([xm_ref[0], xh_ref[0][:, :halo]], axis=-1)   # (1, t+halo)
    else:
        xm_ref, w1_ref, b1_ref, *rest = refs
        x_row = xm_ref[0]                                                    # (1, t+halo)
    o_ref = rest[-1]
    layer_refs = rest[:-1]

    # ---- Layer 1 (pre_conv folded in): 3 broadcast FMAs on the VPU, exact f32.
    wn = t + halo - 2
    acc = (w1_ref[0] * x_row[:, 0:wn]
           + w1_ref[1] * x_row[:, 1:1 + wn]
           + w1_ref[2] * x_row[:, 2:2 + wn])                 # (CH, wn)
    act = jnp.tanh(acc + b1_ref[...])                        # (CH, wn) f32

    # ---- Layers 2..n: one fused bf16 MXU contraction per layer (K = 9*CH).
    # Manual hi/lo split of the activations (weights pre-split at pack time)
    # gives bf16_3x-equivalent accuracy without the 6-pass fp32 MXU algorithm.
    # NOTE: the lane-shifted slices could be produced with pltpu.roll (XLU) to
    # save vld/vst slots; plain slices are kept for portability.
    for i in range(nlayers - 1):
        w144_ref = layer_refs[2 * i]                         # (CH, 9*CH) bf16
        b_ref = layer_refs[2 * i + 1]                        # (CH, 1)    f32
        a_hi = act.astype(jnp.bfloat16)
        a_lo = (act - a_hi.astype(jnp.float32)).astype(jnp.bfloat16)
        wn = act.shape[1] - 2
        pieces = ([a_hi[:, k:k + wn] for k in range(3)]      # pairs with w_hi
                  + [a_lo[:, k:k + wn] for k in range(3)]    # pairs with w_hi
                  + [a_hi[:, k:k + wn] for k in range(3)])   # pairs with w_lo
        rhs = jnp.concatenate(pieces, axis=0)                # (9*CH, wn) bf16
        acc = jnp.dot(w144_ref[...], rhs,
                      preferred_element_type=jnp.float32)    # (CH, wn) f32
        act = jnp.tanh(acc + b_ref[...])

    o_ref[0] = act.astype(o_ref.dtype)                       # lane-dense (CH, t) store


# --------------------------- wrapper ---------------------------

def foo_forward(x, params, *, l_tile=4096):
    """Pallas forward of Foo.  x: (B, 1, L) f32 (NCL) -> (B, 16, L - 2*nlayers)."""
    B, cin, L = x.shape
    assert cin == 1, "Foo.pre_conv expects a single input channel"
    nlayers = params["nlayers"]
    halo = 2 * nlayers
    l_out = L - halo
    assert l_out >= 1, "input too short for the valid convolutions"

    flat = [params["w1"], params["b1"]]
    for (w, b) in params["layers"]:
        flat += [w, b]

    def _const_spec(p):
        zeros = (0,) * p.ndim
        return pl.BlockSpec(p.shape, lambda b_, l_, _z=zeros: _z)

    multi = l_out > l_tile
    if not multi:
        # Single L tile: one window covering the whole signal.
        t, n_lt = l_out, 1
        x_in = (x,)
        x_specs = [pl.BlockSpec((1, 1, L), lambda b_, l_: (b_, 0, 0))]
    else:
        # Tile L (lane-aligned). The 6-sample halo for tile l is read through a
        # second 128-sample BlockSpec view of the same array at block l+1, so no
        # HBM gather / expanded copy of the input is needed.
        t = max(128, (l_tile // 128) * 128)
        n_lt = pl.cdiv(l_out, t)
        l_pad = n_lt * t + 128
        x_pad = jnp.pad(x, ((0, 0), (0, 0), (0, l_pad - L)))
        nb = t // 128
        x_in = (x_pad, x_pad)
        x_specs = [
            pl.BlockSpec((1, 1, t), lambda b_, l_: (b_, 0, l_)),
            pl.BlockSpec((1, 1, 128), lambda b_, l_, _nb=nb: (b_, 0, (l_ + 1) * _nb)),
        ]

    out = pl.pallas_call(
        functools.partial(_fused_foo_kernel, nlayers=nlayers, t=t, multi=multi),
        out_shape=jax.ShapeDtypeStruct((B, CH, n_lt * t), jnp.float32),
        grid=(B, n_lt),
        in_specs=x_specs + [_const_spec(p) for p in flat],
        out_specs=pl.BlockSpec((1, CH, t), lambda b_, l_: (b_, 0, l_)),
        compiler_params=pltpu.CompilerParams(
            dimension_semantics=("parallel", "parallel")),
    )(*x_in, *flat)

    return out if n_lt * t == l_out else out[:, :, :l_out]


# --------------------------- params (PyTorch layout) ---------------------------

def init_pt_params(key, nlayers=3):
    """Random params in PyTorch Conv1d layout: weight (Cout, Cin, K), bias (Cout,)."""
    ks = jax.random.split(key, 2 + 2 * nlayers)
    p = {
        "pre_w": 0.5 * jax.random.normal(ks[0], (CH, 1, 1), jnp.float32),
        "pre_b": 0.5 * jax.random.normal(ks[1], (CH,), jnp.float32),
        "layers": [],
    }
    for i in range(nlayers):
        w = 0.3 * jax.random.normal(ks[2 + 2 * i], (CH, CH, 3), jnp.float32)
        b = 0.3 * jax.random.normal(ks[3 + 2 * i], (CH,), jnp.float32)
        p["layers"].append((w, b))
    return p


def _split_f32_to_bf16(w):
    hi = w.astype(jnp.bfloat16)
    lo = (w - hi.astype(jnp.float32)).astype(jnp.bfloat16)
    return hi, lo


def pack_params(pt):
    """Convert PyTorch-layout params to the fused-kernel layout.

    * pre_conv is folded into layer 1:  eff_w1[k,o] = sum_c W1[o,c,k]*pre_w[c],
      eff_b1[o] = b1[o] + sum_{k,c} W1[o,c,k]*pre_b[c].
    * Layers >= 2 are tap-concatenated and hi/lo bf16-split:
      w144 = [w_hi | w_hi | w_lo], paired in-kernel with [a_hi; a_lo; a_hi].
    """
    pre_w = pt["pre_w"][:, 0, 0]                                    # (CH,)
    pre_b = pt["pre_b"]                                             # (CH,)
    w1, b1 = pt["layers"][0]                                        # (CH, CH, 3), (CH,)
    eff_w1 = jnp.einsum("ock,c->ko", w1, pre_w,
                        precision=_HIGHEST)[:, :, None]             # (3, CH, 1)
    eff_b1 = (b1 + jnp.einsum("ock,c->o", w1, pre_b,
                              precision=_HIGHEST))[:, None]         # (CH, 1)
    layers = []
    for (w, b) in pt["layers"][1:]:
        w_cat = jnp.concatenate([w[:, :, k] for k in range(3)], axis=1)   # (CH, 3*CH) f32
        w_hi, w_lo = _split_f32_to_bf16(w_cat)
        w144 = jnp.concatenate([w_hi, w_hi, w_lo], axis=1)                # (CH, 9*CH) bf16
        layers.append((w144, b[:, None]))
    return {"nlayers": len(pt["layers"]), "w1": eff_w1, "b1": eff_b1,
            "layers": layers}


# --------------------------- pure-JAX reference ---------------------------

def foo_forward_ref(x, pt_params):
    out = pt_params["pre_w"][:, 0, 0][None, :, None] * x \
        + pt_params["pre_b"][None, :, None]                         # (B, CH, L)
    for (w, b) in pt_params["layers"]:
        lo = out.shape[2] - 2
        acc = b[None, :, None]
        for k in range(3):
            acc = acc + jnp.einsum("oc,bcl->bol", w[:, :, k], out[:, :, k:k + lo],
                                   precision=_HIGHEST)
        out = jnp.tanh(acc)
    return out


# TODO(synk): forward_dist's torch.distributions.Normal(out, 1) wrapper is a
# distribution object, not a tensor op; only the deterministic forward is built.

if __name__ == "__main__":
    key = jax.random.PRNGKey(0)
    kx, kp, kx2 = jax.random.split(key, 3)

    nlayers = 3
    pt_params = init_pt_params(kp, nlayers=nlayers)
    params = pack_params(pt_params)

    # Small shape matching the PyTorch module: x = (B, 1, L) = (2, 1, 16)
    B, L = 2, 16
    x = jax.random.normal(kx, (B, 1, L), jnp.float32)
    out = jax.block_until_ready(foo_forward(x, params))
    ref = foo_forward_ref(x, pt_params)
    assert out.shape == (B, CH, L - 2 * nlayers), out.shape
    assert jnp.allclose(out, ref, atol=2e-3, rtol=2e-3), \
        float(jnp.max(jnp.abs(out - ref)))

    # Also exercise the L-tiled (multi grid-step, halo-block) path.
    L2 = 400
    x2 = jax.random.normal(kx2, (B, 1, L2), jnp.float32)
    out2 = jax.block_until_ready(foo_forward(x2, params, l_tile=128))
    ref2 = foo_forward_ref(x2, pt_params)
    assert out2.shape == (B, CH, L2 - 2 * nlayers), out2.shape
    assert jnp.allclose(out2, ref2, atol=2e-3, rtol=2e-3), \
        float(jnp.max(jnp.abs(out2 - ref2)))

    print("KERNEL_OK")
</pallas_src>

<mosaic_0001>
module attributes {stable_mosaic.version = 11 : i64} {
  func.func @_fused_foo_kernel(%arg0: i32, %arg1: i32, %arg2: memref<1x1x16xf32, #tpu.memory_space<vmem>>, %arg3: memref<3x16x1xf32, #tpu.memory_space<vmem>>, %arg4: memref<16x1xf32, #tpu.memory_space<vmem>>, %arg5: memref<16x144xbf16, #tpu.memory_space<vmem>>, %arg6: memref<16x1xf32, #tpu.memory_space<vmem>>, %arg7: memref<16x144xbf16, #tpu.memory_space<vmem>>, %arg8: memref<16x1xf32, #tpu.memory_space<vmem>>, %arg9: memref<1x16x10xf32, #tpu.memory_space<vmem>>) attributes {dimension_semantics = [#tpu.dimension_semantics<parallel>, #tpu.dimension_semantics<parallel>], iteration_bounds = array<i64: 2, 1>, scalar_prefetch = 0 : i64, scratch_operands = 0 : i64, tpu.core_type = #tpu.core_type<tc>, window_params = [{transform_indices = @transform_0, window_bounds = array<i64: 1, 1, 16>}, {pipeline_mode = #tpu.pipeline_mode<synchronous>, transform_indices = @transform_1, window_bounds = array<i64: 3, 16, 1>}, {pipeline_mode = #tpu.pipeline_mode<synchronous>, transform_indices = @transform_2, window_bounds = array<i64: 16, 1>}, {pipeline_mode = #tpu.pipeline_mode<synchronous>, transform_indices = @transform_3, window_bounds = array<i64: 16, 144>}, {pipeline_mode = #tpu.pipeline_mode<synchronous>, transform_indices = @transform_4, window_bounds = array<i64: 16, 1>}, {pipeline_mode = #tpu.pipeline_mode<synchronous>, transform_indices = @transform_5, window_bounds = array<i64: 16, 144>}, {pipeline_mode = #tpu.pipeline_mode<synchronous>, transform_indices = @transform_6, window_bounds = array<i64: 16, 1>}, {transform_indices = @transform_7, window_bounds = array<i64: 1, 16, 10>}]} {
    %c0 = arith.constant 0 : index
    %c0_0 = arith.constant 0 : index
    %c0_1 = arith.constant 0 : index
    %0 = vector.load %arg2[%c0, %c0_0, %c0_1] : memref<1x1x16xf32, #tpu.memory_space<vmem>>, vector<1x1x16xf32>
    %1 = vector.shape_cast %0 : vector<1x1x16xf32> to vector<1x16xf32>
    %c0_2 = arith.constant 0 : index
    %c0_3 = arith.constant 0 : index
    %c0_4 = arith.constant 0 : index
    %2 = vector.load %arg3[%c0_2, %c0_3, %c0_4] : memref<3x16x1xf32, #tpu.memory_space<vmem>>, vector<1x16x1xf32>
    %3 = vector.shape_cast %2 : vector<1x16x1xf32> to vector<16x1xf32>
    %4 = vector.extract_strided_slice %1 {offsets = [0, 0], sizes = [1, 14], strides = [1, 1]} : vector<1x16xf32> to vector<1x14xf32>
    %5 = vector.broadcast %3 : vector<16x1xf32> to vector<16x14xf32>
    %6 = vector.broadcast %4 : vector<1x14xf32> to vector<16x14xf32>
    %7 = arith.mulf %5, %6 : vector<16x14xf32>
    %c1 = arith.constant 1 : index
    %c0_5 = arith.constant 0 : index
    %c0_6 = arith.constant 0 : index
    %8 = vector.load %arg3[%c1, %c0_5, %c0_6] : memref<3x16x1xf32, #tpu.memory_space<vmem>>, vector<1x16x1xf32>
    %9 = vector.shape_cast %8 : vector<1x16x1xf32> to vector<16x1xf32>
    %10 = vector.extract_strided_slice %1 {offsets = [0, 1], sizes = [1, 14], strides = [1, 1]} : vector<1x16xf32> to vector<1x14xf32>
    %11 = vector.broadcast %9 : vector<16x1xf32> to vector<16x14xf32>
    %12 = vector.broadcast %10 : vector<1x14xf32> to vector<16x14xf32>
    %13 = arith.mulf %11, %12 : vector<16x14xf32>
    %14 = arith.addf %7, %13 : vector<16x14xf32>
    %c2 = arith.constant 2 : index
    %c0_7 = arith.constant 0 : index
    %c0_8 = arith.constant 0 : index
    %15 = vector.load %arg3[%c2, %c0_7, %c0_8] : memref<3x16x1xf32, #tpu.memory_space<vmem>>, vector<1x16x1xf32>
    %16 = vector.shape_cast %15 : vector<1x16x1xf32> to vector<16x1xf32>
    %17 = vector.extract_strided_slice %1 {offsets = [0, 2], sizes = [1, 14], strides = [1, 1]} : vector<1x16xf32> to vector<1x14xf32>
    %18 = vector.broadcast %16 : vector<16x1xf32> to vector<16x14xf32>
    %19 = vector.broadcast %17 : vector<1x14xf32> to vector<16x14xf32>
    %20 = arith.mulf %18, %19 : vector<16x14xf32>
    %21 = arith.addf %14, %20 : vector<16x14xf32>
    %c0_9 = arith.constant 0 : index
    %c0_10 = arith.constant 0 : index
    %22 = vector.load %arg4[%c0_9, %c0_10] : memref<16x1xf32, #tpu.memory_space<vmem>>, vector<16x1xf32>
    %23 = vector.broadcast %22 : vector<16x1xf32> to vector<16x14xf32>
    %24 = arith.addf %21, %23 : vector<16x14xf32>
    %25 = math.tanh %24 : vector<16x14xf32>
    %26 = arith.truncf %25 : vector<16x14xf32> to vector<16x14xbf16>
    %27 = arith.extf %26 : vector<16x14xbf16> to vector<16x14xf32>
    %28 = arith.subf %25, %27 : vector<16x14xf32>
    %29 = arith.truncf %28 : vector<16x14xf32> to vector<16x14xbf16>
    %30 = vector.extract_strided_slice %26 {offsets = [0, 0], sizes = [16, 12], strides = [1, 1]} : vector<16x14xbf16> to vector<16x12xbf16>
    %31 = vector.extract_strided_slice %26 {offsets = [0, 1], sizes = [16, 12], strides = [1, 1]} : vector<16x14xbf16> to vector<16x12xbf16>
    %32 = vector.extract_strided_slice %26 {offsets = [0, 2], sizes = [16, 12], strides = [1, 1]} : vector<16x14xbf16> to vector<16x12xbf16>
    %33 = vector.extract_strided_slice %29 {offsets = [0, 0], sizes = [16, 12], strides = [1, 1]} : vector<16x14xbf16> to vector<16x12xbf16>
    %34 = vector.extract_strided_slice %29 {offsets = [0, 1], sizes = [16, 12], strides = [1, 1]} : vector<16x14xbf16> to vector<16x12xbf16>
    %35 = vector.extract_strided_slice %29 {offsets = [0, 2], sizes = [16, 12], strides = [1, 1]} : vector<16x14xbf16> to vector<16x12xbf16>
    %36 = vector.extract_strided_slice %26 {offsets = [0, 0], sizes = [16, 12], strides = [1, 1]} : vector<16x14xbf16> to vector<16x12xbf16>
    %37 = vector.extract_strided_slice %26 {offsets = [0, 1], sizes = [16, 12], strides = [1, 1]} : vector<16x14xbf16> to vector<16x12xbf16>
    %38 = vector.extract_strided_slice %26 {offsets = [0, 2], sizes = [16, 12], strides = [1, 1]} : vector<16x14xbf16> to vector<16x12xbf16>
    %39 = tpu.concatenate %30, %31, %32, %33, %34, %35, %36, %37, %38 in 0 : vector<16x12xbf16>, vector<16x12xbf16>, vector<16x12xbf16>, vector<16x12xbf16>, vector<16x12xbf16>, vector<16x12xbf16>, vector<16x12xbf16>, vector<16x12xbf16>, vector<16x12xbf16> -> vector<144x12xbf16>
    %c0_11 = arith.constant 0 : index
    %c0_12 = arith.constant 0 : index
    %40 = vector.load %arg5[%c0_11, %c0_12] : memref<16x144xbf16, #tpu.memory_space<vmem>>, vector<16x144xbf16>
    %cst = arith.constant dense<0.000000e+00> : vector<16x12xf32>
    %41 = tpu.matmul %40, %39, %cst {dimension_numbers = #tpu.dot_dimension_numbers<[1], [0], [0], [1], [0, 0, 1, 1], [], []>} : vector<16x144xbf16>, vector<144x12xbf16>, vector<16x12xf32> -> vector<16x12xf32>
    %c0_13 = arith.constant 0 : index
    %c0_14 = arith.constant 0 : index
    %42 = vector.load %arg6[%c0_13, %c0_14] : memref<16x1xf32, #tpu.memory_space<vmem>>, vector<16x1xf32>
    %43 = vector.broadcast %42 : vector<16x1xf32> to vector<16x12xf32>
    %44 = arith.addf %41, %43 : vector<16x12xf32>
    %45 = math.tanh %44 : vector<16x12xf32>
    %46 = arith.truncf %45 : vector<16x12xf32> to vector<16x12xbf16>
    %47 = arith.extf %46 : vector<16x12xbf16> to vector<16x12xf32>
    %48 = arith.subf %45, %47 : vector<16x12xf32>
    %49 = arith.truncf %48 : vector<16x12xf32> to vector<16x12xbf16>
    %50 = vector.extract_strided_slice %46 {offsets = [0, 0], sizes = [16, 10], strides = [1, 1]} : vector<16x12xbf16> to vector<16x10xbf16>
    %51 = vector.extract_strided_slice %46 {offsets = [0, 1], sizes = [16, 10], strides = [1, 1]} : vector<16x12xbf16> to vector<16x10xbf16>
    %52 = vector.extract_strided_slice %46 {offsets = [0, 2], sizes = [16, 10], strides = [1, 1]} : vector<16x12xbf16> to vector<16x10xbf16>
    %53 = vector.extract_strided_slice %49 {offsets = [0, 0], sizes = [16, 10], strides = [1, 1]} : vector<16x12xbf16> to vector<16x10xbf16>
    %54 = vector.extract_strided_slice %49 {offsets = [0, 1], sizes = [16, 10], strides = [1, 1]} : vector<16x12xbf16> to vector<16x10xbf16>
    %55 = vector.extract_strided_slice %49 {offsets = [0, 2], sizes = [16, 10], strides = [1, 1]} : vector<16x12xbf16> to vector<16x10xbf16>
    %56 = vector.extract_strided_slice %46 {offsets = [0, 0], sizes = [16, 10], strides = [1, 1]} : vector<16x12xbf16> to vector<16x10xbf16>
    %57 = vector.extract_strided_slice %46 {offsets = [0, 1], sizes = [16, 10], strides = [1, 1]} : vector<16x12xbf16> to vector<16x10xbf16>
    %58 = vector.extract_strided_slice %46 {offsets = [0, 2], sizes = [16, 10], strides = [1, 1]} : vector<16x12xbf16> to vector<16x10xbf16>
    %59 = tpu.concatenate %50, %51, %52, %53, %54, %55, %56, %57, %58 in 0 : vector<16x10xbf16>, vector<16x10xbf16>, vector<16x10xbf16>, vector<16x10xbf16>, vector<16x10xbf16>, vector<16x10xbf16>, vector<16x10xbf16>, vector<16x10xbf16>, vector<16x10xbf16> -> vector<144x10xbf16>
    %c0_15 = arith.constant 0 : index
    %c0_16 = arith.constant 0 : index
    %60 = vector.load %arg7[%c0_15, %c0_16] : memref<16x144xbf16, #tpu.memory_space<vmem>>, vector<16x144xbf16>
    %cst_17 = arith.constant dense<0.000000e+00> : vector<16x10xf32>
    %61 = tpu.matmul %60, %59, %cst_17 {dimension_numbers = #tpu.dot_dimension_numbers<[1], [0], [0], [1], [0, 0, 1, 1], [], []>} : vector<16x144xbf16>, vector<144x10xbf16>, vector<16x10xf32> -> vector<16x10xf32>
    %c0_18 = arith.constant 0 : index
    %c0_19 = arith.constant 0 : index
    %62 = vector.load %arg8[%c0_18, %c0_19] : memref<16x1xf32, #tpu.memory_space<vmem>>, vector<16x1xf32>
    %63 = vector.broadcast %62 : vector<16x1xf32> to vector<16x10xf32>
    %64 = arith.addf %61, %63 : vector<16x10xf32>
    %65 = math.tanh %64 : vector<16x10xf32>
    %c0_20 = arith.constant 0 : index
    %c0_21 = arith.constant 0 : index
    %c0_22 = arith.constant 0 : index
    %66 = vector.load %arg9[%c0_20, %c0_21, %c0_22] : memref<1x16x10xf32, #tpu.memory_space<vmem>>, vector<1x16x10xf32>
    %67 = vector.shape_cast %66 : vector<1x16x10xf32> to vector<16x10xf32>
    %68 = vector.shape_cast %65 : vector<16x10xf32> to vector<1x16x10xf32>
    tpu.vector_store %arg9[%c0_20, %c0_21, %c0_22], %68 {strides = array<i32>} : memref<1x16x10xf32, #tpu.memory_space<vmem>>, vector<1x16x10xf32>,
    return
  }
  func.func @transform_0(%arg0: i32, %arg1: i32) -> (i32, i32, i32) {
    %c0_i32 = arith.constant 0 : i32
    %c0_i32_0 = arith.constant 0 : i32
    %c0_i32_1 = arith.constant 0 : i32
    return %arg0, %c0_i32, %c0_i32_0 : i32, i32, i32
  }
  func.func @transform_1(%arg0: i32, %arg1: i32) -> (i32, i32, i32) {
    %c0_i32 = arith.constant 0 : i32
    %c0_i32_0 = arith.constant 0 : i32
    %c0_i32_1 = arith.constant 0 : i32
    %c0_i32_2 = arith.constant 0 : i32
    return %c0_i32, %c0_i32_0, %c0_i32_1 : i32, i32, i32
  }
  func.func @transform_2(%arg0: i32, %arg1: i32) -> (i32, i32) {
    %c0_i32 = arith.constant 0 : i32
    %c0_i32_0 = arith.constant 0 : i32
    %c0_i32_1 = arith.constant 0 : i32
    return %c0_i32, %c0_i32_0 : i32, i32
  }
  func.func @transform_3(%arg0: i32, %arg1: i32) -> (i32, i32) {
    %c0_i32 = arith.constant 0 : i32
    %c0_i32_0 = arith.constant 0 : i32
    %c0_i32_1 = arith.constant 0 : i32
    return %c0_i32, %c0_i32_0 : i32, i32
  }
  func.func @transform_4(%arg0: i32, %arg1: i32) -> (i32, i32) {
    %c0_i32 = arith.constant 0 : i32
    %c0_i32_0 = arith.constant 0 : i32
    %c0_i32_1 = arith.constant 0 : i32
    return %c0_i32, %c0_i32_0 : i32, i32
  }
  func.func @transform_5(%arg0: i32, %arg1: i32) -> (i32, i32) {
    %c0_i32 = arith.constant 0 : i32
    %c0_i32_0 = arith.constant 0 : i32
    %c0_i32_1 = arith.constant 0 : i32
    return %c0_i32, %c0_i32_0 : i32, i32
  }
  func.func @transform_6(%arg0: i32, %arg1: i32) -> (i32, i32) {
    %c0_i32 = arith.constant 0 : i32
    %c0_i32_0 = arith.constant 0 : i32
    %c0_i32_1 = arith.constant 0 : i32
    return %c0_i32, %c0_i32_0 : i32, i32
  }
  func.func @transform_7(%arg0: i32, %arg1: i32) -> (i32, i32, i32) {
    %c0_i32 = arith.constant 0 : i32
    %c0_i32_0 = arith.constant 0 : i32
    return %arg0, %c0_i32, %arg1 : i32, i32, i32
  }
}

</mosaic_0001>

<llo_original>
// kernel: tpu_custom_call.1
$region0: #{tpu_custom_call.1}
  #allocation0 [shape = 'u32[]', space=smem, size = 0x4, offset = 0x4, fixed_abs, tag = 'smem constant byte address 0x4 - core index']
  #allocation1 [shape = 'u32[72,128]{1,0:T(1,128)}', space=vmem, size = 0x9000, scoped, tag = 'internal scratch']
  %s0 = inlined_call_operand.vmem [shape: f32[2,1,16], index: 0, kind: input, shape index: {}]
  %s1 = inlined_call_operand.vmem [shape: f32[3,16,1], index: 1, kind: input, shape index: {}]
  %s2 = inlined_call_operand.vmem [shape: f32[16,1], index: 2, kind: input, shape index: {}]
  %s3 = inlined_call_operand.vmem [shape: bf16[16,144], index: 3, kind: input, shape index: {}]
  %s4 = inlined_call_operand.vmem [shape: f32[16,1], index: 4, kind: input, shape index: {}]
  %s5 = inlined_call_operand.vmem [shape: bf16[16,144], index: 5, kind: input, shape index: {}]
  %s6 = inlined_call_operand.vmem [shape: f32[16,1], index: 6, kind: input, shape index: {}]
  %s7 = inlined_call_operand.vmem [shape: f32[2,16,10], index: 7, kind: output, shape index: {}]
  %s8 = sld [smem:[#allocation0]]
  $region61: #{tpu_custom_call.1} parent=0
    _
  %s10 = ssub.s32 1, %s8
  %s11 = scalar_select 0, %s10, %s8
  loop: start=0, step=1, limit=4
  $region2: #{tpu_custom_call.1} parent=0 // loop_pre_header
    _
  $region3: #{tpu_custom_call.1} parent=0 // loop_header
    %s13 = sphi 0, %s17
    %p14 = scmp.ge.s32.totalorder %s13, 4
    %s20 = sphi 0, %s32
    %s21 = sphi 0, %s28
    %s22 = sphi 0, %s20
    %s23 = sphi 0, %s21
    %s24 = sphi 0, %s22
    %s25 = sphi 0, %s23
    %s35 = sphi 0, %s37
    %s38 = sphi 0, %s35
    %s39 = sphi 0, %s38
    %s55 = sphi 0, %s39
    %s59 = sphi 0, %s59
    %s61 = sphi 0, %s59
    %s62 = sphi 0, %s61
    %s76 = sphi 0, %s62
    %s80 = sphi 0, %s80
    %s82 = sphi 0, %s80
    %s83 = sphi 0, %s82
    %s97 = sphi 0, %s83
    %s101 = sphi 0, %s101
    %s103 = sphi 0, %s101
    %s104 = sphi 0, %s103
    %s118 = sphi 0, %s104
    %s122 = sphi 0, %s122
    %s124 = sphi 0, %s122
    %s125 = sphi 0, %s124
    %s139 = sphi 0, %s125
    %s143 = sphi 0, %s143
    %s145 = sphi 0, %s143
    %s146 = sphi 0, %s145
    %s160 = sphi 0, %s146
    %s164 = sphi 0, %s164
    %s166 = sphi 0, %s164
    %s167 = sphi 0, %s166
    %s181 = sphi 0, %s167
    %s189 = sphi 0, %s191
    %s192 = sphi 0, %s189
    %s193 = sphi 0, %s192
    %s209 = sphi 0, %s193
  $region4: #{tpu_custom_call.1} parent=0 // loop_header_branch
    %16 = sbr.rel (%p14) target = $region8
  $region5: #{tpu_custom_call.1} parent=0 // loop_body
    %s18 = ssub.s32 %s13, 1
    %s19 = ssub.s32 %s13, 2
    %s26 = sadd.s32 1, %s21
    %p27 = scmp.ge.s32.totalorder %s26, 1
    %s28 = scalar_select %p27, 0, %s26
    %s29 = sadd.s32 1, %s20
    %s30 = scalar_select %p27, %s29, %s20
    %p31 = scmp.ge.s32.totalorder %s30, 2
    %s32 = scalar_select %p31, 0, %s30
    %s33 = ssub.s32 %s20, %s32
    %p34 = scmp.eq.s32.totalorder %s33, 0
    %s36 = sadd.s32 %s35, 1
    %s37 = scalar_select %p34, %s35, %s36
    %p40 = pneg %p34
    %p41 = scmp.eq.s32.totalorder %s13, 1
    %p42 = por %p40, %p41
    %p43 = scmp.ne.s32.totalorder %s35, %s38
    %p44 = scmp.eq.s32.totalorder %s13, 0
    %p45 = por %p43, %p44
    %p46 = scmp.ne.s32.totalorder %s35, %s38
    %p47 = scmp.eq.s32.totalorder %s18, 1
    %p48 = por %p46, %p47
    %p49 = scmp.ne.s32.totalorder %s38, %s39
    %p50 = scmp.eq.s32.totalorder %s18, 0
    %p51 = por %p49, %p50
    %p52 = scmp.ne.s32.totalorder %s38, %s39
    %p53 = scmp.eq.s32.totalorder %s19, 1
    %p54 = por %p52, %p53
    %p56 = scmp.ne.s32.totalorder %s39, %s55
    %p57 = scmp.eq.s32.totalorder %s19, 0
    %p58 = por %p56, %p57
    %s60 = sadd.s32 %s59, 1
    %p63 = scmp.eq.s32.totalorder %s13, 1
    %p64 = scmp.ne.s32.totalorder %s59, %s61
    %p65 = scmp.eq.s32.totalorder %s13, 0
    %p66 = por %p64, %p65
    %p67 = scmp.ne.s32.totalorder %s59, %s61
    %p68 = scmp.eq.s32.totalorder %s18, 1
    %p69 = por %p67, %p68
    %p70 = scmp.ne.s32.totalorder %s61, %s62
    %p71 = scmp.eq.s32.totalorder %s18, 0
    %p72 = por %p70, %p71
    %p73 = scmp.ne.s32.totalorder %s61, %s62
    %p74 = scmp.eq.s32.totalorder %s19, 1
    %p75 = por %p73, %p74
    %p77 = scmp.ne.s32.totalorder %s62, %s76
    %p78 = scmp.eq.s32.totalorder %s19, 0
    %p79 = por %p77, %p78
    %s81 = sadd.s32 %s80, 1
    %p84 = scmp.eq.s32.totalorder %s13, 1
    %p85 = scmp.ne.s32.totalorder %s80, %s82
    %p86 = scmp.eq.s32.totalorder %s13, 0
    %p87 = por %p85, %p86
    %p88 = scmp.ne.s32.totalorder %s80, %s82
    %p89 = scmp.eq.s32.totalorder %s18, 1
    %p90 = por %p88, %p89
    %p91 = scmp.ne.s32.totalorder %s82, %s83
    %p92 = scmp.eq.s32.totalorder %s18, 0
    %p93 = por %p91, %p92
    %p94 = scmp.ne.s32.totalorder %s82, %s83
    %p95 = scmp.eq.s32.totalorder %s19, 1
    %p96 = por %p94, %p95
    %p98 = scmp.ne.s32.totalorder %s83, %s97
    %p99 = scmp.eq.s32.totalorder %s19, 0
    %p100 = por %p98, %p99
    %s102 = sadd.s32 %s101, 1
    %p105 = scmp.eq.s32.totalorder %s13, 1
    %p106 = scmp.ne.s32.totalorder %s101, %s103
    %p107 = scmp.eq.s32.totalorder %s13, 0
    %p108 = por %p106, %p107
    %p109 = scmp.ne.s32.totalorder %s101, %s103
    %p110 = scmp.eq.s32.totalorder %s18, 1
    %p111 = por %p109, %p110
    %p112 = scmp.ne.s32.totalorder %s103, %s104
    %p113 = scmp.eq.s32.totalorder %s18, 0
    %p114 = por %p112, %p113
    %p115 = scmp.ne.s32.totalorder %s103, %s104
    %p116 = scmp.eq.s32.totalorder %s19, 1
    %p117 = por %p115, %p116
    %p119 = scmp.ne.s32.totalorder %s104, %s118
    %p120 = scmp.eq.s32.totalorder %s19, 0
    %p121 = por %p119, %p120
    %s123 = sadd.s32 %s122, 1
    %p126 = scmp.eq.s32.totalorder %s13, 1
    %p127 = scmp.ne.s32.totalorder %s122, %s124
    %p128 = scmp.eq.s32.totalorder %s13, 0
    %p129 = por %p127, %p128
    %p130 = scmp.ne.s32.totalorder %s122, %s124
    %p131 = scmp.eq.s32.totalorder %s18, 1
    %p132 = por %p130, %p131
    %p133 = scmp.ne.s32.totalorder %s124, %s125
    %p134 = scmp.eq.s32.totalorder %s18, 0
    %p135 = por %p133, %p134
    %p136 = scmp.ne.s32.totalorder %s124, %s125
    %p137 = scmp.eq.s32.totalorder %s19, 1
    %p138 = por %p136, %p137
    %p140 = scmp.ne.s32.totalorder %s125, %s139
    %p141 = scmp.eq.s32.totalorder %s19, 0
    %p142 = por %p140, %p141
    %s144 = sadd.s32 %s143, 1
    %p147 = scmp.eq.s32.totalorder %s13, 1
    %p148 = scmp.ne.s32.totalorder %s143, %s145
    %p149 = scmp.eq.s32.totalorder %s13, 0
    %p150 = por %p148, %p149
    %p151 = scmp.ne.s32.totalorder %s143, %s145
    %p152 = scmp.eq.s32.totalorder %s18, 1
    %p153 = por %p151, %p152
    %p154 = scmp.ne.s32.totalorder %s145, %s146
    %p155 = scmp.eq.s32.totalorder %s18, 0
    %p156 = por %p154, %p155
    %p157 = scmp.ne.s32.totalorder %s145, %s146
    %p158 = scmp.eq.s32.totalorder %s19, 1
    %p159 = por %p157, %p158
    %p161 = scmp.ne.s32.totalorder %s146, %s160
    %p162 = scmp.eq.s32.totalorder %s19, 0
    %p163 = por %p161, %p162
    %s165 = sadd.s32 %s164, 1
    %p168 = scmp.eq.s32.totalorder %s13, 1
    %p169 = scmp.ne.s32.totalorder %s164, %s166
    %p170 = scmp.eq.s32.totalorder %s13, 0
    %p171 = por %p169, %p170
    %p172 = scmp.ne.s32.totalorder %s164, %s166
    %p173 = scmp.eq.s32.totalorder %s18, 1
    %p174 = por %p172, %p173
    %p175 = scmp.ne.s32.totalorder %s166, %s167
    %p176 = scmp.eq.s32.totalorder %s18, 0
    %p177 = por %p175, %p176
    %p178 = scmp.ne.s32.totalorder %s166, %s167
    %p179 = scmp.eq.s32.totalorder %s19, 1
    %p180 = por %p178, %p179
    %p182 = scmp.ne.s32.totalorder %s167, %s181
    %p183 = scmp.eq.s32.totalorder %s19, 0
    %p184 = por %p182, %p183
    %s185 = ssub.s32 %s20, %s32
    %s186 = ssub.s32 %s21, %s28
    %s187 = sor.u32 %s185, %s186
    %p188 = scmp.eq.s32.totalorder %s187, 0
    %s190 = sadd.s32 %s189, 1
    %s191 = scalar_select %p188, %s189, %s190
    %p194 = pneg %p188
    %p195 = scmp.eq.s32.totalorder %s13, 1
    %p196 = por %p194, %p195
    %p197 = scmp.ne.s32.totalorder %s189, %s192
    %p198 = scmp.eq.s32.totalorder %s13, 0
    %p199 = por %p197, %p198
    %p200 = scmp.ne.s32.totalorder %s189, %s192
    %p201 = scmp.eq.s32.totalorder %s18, 1
    %p202 = por %p200, %p201
    %p203 = scmp.ne.s32.totalorder %s192, %s193
    %p204 = scmp.eq.s32.totalorder %s18, 0
    %p205 = por %p203, %p204
    %p206 = scmp.ne.s32.totalorder %s192, %s193
    %p207 = scmp.eq.s32.totalorder %s19, 1
    %p208 = por %p206, %p207
    %p210 = scmp.ne.s32.totalorder %s193, %s209
    %p211 = scmp.eq.s32.totalorder %s19, 0
    %p212 = por %p210, %p211
    %p213 = scmp.le.s32.totalorder 1, %s13
    %p214 = scmp.lt.s32.totalorder %s13, 3
    %p215 = pnand %p213, %p214
    %p216 = pneg %p215
    // Predicated region
    $region9: #{tpu_custom_call.1} parent=5 // pred_check
      _
    $region10: #{tpu_custom_call.1} parent=5 // pred_check_branch
      %218 = sbr.rel (%p215) target = $region12
    $region11: #{tpu_custom_call.1} parent=5 // pred_region
      %s219 = ssub.s32 %s13, 1
      // Predicated region
      $region13: #{tpu_custom_call.1} parent=11 // pred_check
        %p220 = pneg %p72
      $region14: #{tpu_custom_call.1} parent=11 // pred_check_branch
        %222 = sbr.rel (%p220) target = $region16
      $region15: #{tpu_custom_call.1} parent=11 // pred_region
        _
      $region16: #{tpu_custom_call.1} parent=11 // pred_fallthru
        _
      // Predicated region
      $region17: #{tpu_custom_call.1} parent=11 // pred_check
        %p223 = pneg %p93
      $region18: #{tpu_custom_call.1} parent=11 // pred_check_branch
        %225 = sbr.rel (%p223) target = $region20
      $region19: #{tpu_custom_call.1} parent=11 // pred_region
        _
      $region20: #{tpu_custom_call.1} parent=11 // pred_fallthru
        _
      // Predicated region
      $region21: #{tpu_custom_call.1} parent=11 // pred_check
        %p226 = pneg %p114
      $region22: #{tpu_custom_call.1} parent=11 // pred_check_branch
        %228 = sbr.rel (%p226) target = $region24
      $region23: #{tpu_custom_call.1} parent=11 // pred_region
        _
      $region24: #{tpu_custom_call.1} parent=11 // pred_fallthru
        _
      // Predicated region
      $region25: #{tpu_custom_call.1} parent=11 // pred_check
        %p229 = pneg %p135
      $region26: #{tpu_custom_call.1} parent=11 // pred_check_branch
        %231 = sbr.rel (%p229) target = $region28
      $region27: #{tpu_custom_call.1} parent=11 // pred_region
        _
      $region28: #{tpu_custom_call.1} parent=11 // pred_fallthru
        _
      // Predicated region
      $region29: #{tpu_custom_call.1} parent=11 // pred_check
        %p232 = pneg %p156
      $region30: #{tpu_custom_call.1} parent=11 // pred_check_branch
        %234 = sbr.rel (%p232) target = $region32
      $region31: #{tpu_custom_call.1} parent=11 // pred_region
        _
      $region32: #{tpu_custom_call.1} parent=11 // pred_fallthru
        _
      // Predicated region
      $region33: #{tpu_custom_call.1} parent=11 // pred_check
        %p235 = pneg %p177
      $region34: #{tpu_custom_call.1} parent=11 // pred_check_branch
        %237 = sbr.rel (%p235) target = $region36
      $region35: #{tpu_custom_call.1} parent=11 // pred_region
        _
      $region36: #{tpu_custom_call.1} parent=11 // pred_fallthru
        _
    $region12: #{tpu_custom_call.1} parent=5 // pred_fallthru
      _
    %p238 = scmp.lt.s32.totalorder %s13, 2
    // Predicated region
    $region37: #{tpu_custom_call.1} parent=5 // pred_check
      %p239 = pneg %p238
    $region38: #{tpu_custom_call.1} parent=5 // pred_check_branch
      %241 = sbr.rel (%p239) target = $region40
    $region39: #{tpu_custom_call.1} parent=5 // pred_region
      // Predicated region
      $region41: #{tpu_custom_call.1} parent=39 // pred_check
        %p242 = pneg %p45
      $region42: #{tpu_custom_call.1} parent=39 // pred_check_branch
        %244 = sbr.rel (%p242) target = $region44
      $region43: #{tpu_custom_call.1} parent=39 // pred_region
        %p245 = scmp.lt.s32.totalorder %s20, 1
        %s246 = scalar_select %p245, %s20, 1
        %s247 = scalar_lea.vmem %s0, %s246
      $region44: #{tpu_custom_call.1} parent=39 // pred_fallthru
        _
    $region40: #{tpu_custom_call.1} parent=5 // pred_fallthru
      _
    %p248 = scmp.le.s32.totalorder 1, %s13
    %p249 = scmp.lt.s32.totalorder %s13, 3
    %p250 = pnand %p248, %p249
    %p251 = pneg %p250
    // Predicated region
    $region45: #{tpu_custom_call.1} parent=5 // pred_check
      _
    $region46: #{tpu_custom_call.1} parent=5 // pred_check_branch
      %253 = sbr.rel (%p250) target = $region48
    $region47: #{tpu_custom_call.1} parent=5 // pred_region
      %s254 = ssub.s32 %s13, 1
      %p255 = scmp.lt.s32.totalorder %s22, 1
      %s256 = scalar_select %p255, %s22, 1
      %s257 = scalar_lea.vmem %s0, %s256
      %p258 = pneg %p51
      %p259 = pneg %p48
      %p260 = pneg %p72
      %p261 = pneg %p69
      %p262 = pneg %p93
      %p263 = pneg %p90
      %p264 = pneg %p114
      %p265 = pneg %p111
      %p266 = pneg %p135
      %p267 = pneg %p132
      %p268 = pneg %p156
      %p269 = pneg %p153
      %p270 = pneg %p177
      %p271 = pneg %p174
      %p272 = pneg %p205
      %p273 = pneg %p202
      %p274 = scmp.lt.s32.totalorder %s22, 1
      %s275 = scalar_select %p274, %s22, 1
      %p276 = scmp.lt.s32.totalorder %s23, 0
      %s277 = scalar_select %p276, %s23, 0
      %s278 = smul.addr %s275, 2
      %s279 = sadd.s32 %s277, %s278
      %s280 = smul.addr %s279, 8
      %s281 = scalar_lea.vmem %s7, %s280
      %p282 = scmp.lt.s32.totalorder %s22, 1
      %s283 = scalar_select %p282, %s22, 1
      %s284 = scalar_lea.vmem %s0, %s283
      %p285 = scmp.lt.s32.totalorder %s22, 1
      %s286 = scalar_select %p285, %s22, 1
      %p287 = scmp.lt.s32.totalorder %s23, 0
      %s288 = scalar_select %p287, %s23, 0
      %s289 = smul.addr %s286, 2
      %s290 = sadd.s32 %s288, %s289
      %s291 = smul.addr %s290, 8
      %s292 = scalar_lea.vmem %s7, %s291
      %v294 = vld [vmem:[%s284] sm:$0x1]
      %v295 = vld [vmem:[%s1] sm:$0xff]
      %v296 = vld [vmem:[%s1 + $0x8] sm:$0xff]
      %298 = vset.pattern.permute.xlu0 0
      %299 = vperm.xlu0 %298, %v295
      %v300 = vpop.permute.xlu0 %299
      %303 = vset.pattern.permute.xlu0 0
      %304 = vperm.xlu0 %303, %v296
      %v305 = vpop.permute.xlu0 %304
      %v308 = vperm.slane %v294, 0
      %v310 = vmul.f32 %v300, %v308
      %v311 = vmul.f32 %v305, %v308
      %s312 = scalar_lea.vmem %s1, 16
      %v313 = vld [vmem:[%s312] sm:$0xff]
      %v314 = vld [vmem:[%s312 + $0x8] sm:$0xff]
      %316 = vset.pattern.permute.xlu0 0
      %317 = vperm.xlu0 %316, %v313
      %v318 = vpop.permute.xlu0 %317
      %321 = vset.pattern.permute.xlu0 0
      %322 = vperm.xlu0 %321, %v314
      %v323 = vpop.permute.xlu0 %322
      %v325 = vmul.f32 %v318, %v308
      %v326 = vmul.f32 %v323, %v308
      %329 = vrot.lane.b32.xlu0 %v325, 127
      %v330 = vpop.permute.xlu0 %329
      %331 = vrot.lane.b32.xlu0 %v326, 127
      %v332 = vpop.permute.xlu0 %331
      %v335 = vadd.f32 %v310, %v330
      %v336 = vadd.f32 %v311, %v332
      %s337 = scalar_lea.vmem %s1, 32
      %v338 = vld [vmem:[%s337] sm:$0xff]
      %v339 = vld [vmem:[%s337 + $0x8] sm:$0xff]
      %341 = vset.pattern.permute.xlu0 0
      %342 = vperm.xlu0 %341, %v338
      %v343 = vpop.permute.xlu0 %342
      %346 = vset.pattern.permute.xlu0 0
      %347 = vperm.xlu0 %346, %v339
      %v348 = vpop.permute.xlu0 %347
      %v350 = vmul.f32 %v343, %v308
      %v351 = vmul.f32 %v348, %v308
      %354 = vrot.lane.b32.xlu0 %v350, 126
      %v355 = vpop.permute.xlu0 %354
      %356 = vrot.lane.b32.xlu0 %v351, 126
      %v357 = vpop.permute.xlu0 %356
      %v360 = vadd.f32 %v335, %v355
      %v361 = vadd.f32 %v336, %v357
      %v362 = vld [vmem:[%s2] sm:$0xff]
      %v363 = vld [vmem:[%s2 + $0x8] sm:$0xff]
      %365 = vset.pattern.permute.xlu0 0
      %366 = vperm.xlu0 %365, %v362
      %v367 = vpop.permute.xlu0 %366
      %370 = vset.pattern.permute.xlu0 0
      %371 = vperm.xlu0 %370, %v363
      %v372 = vpop.permute.xlu0 %371
      %v374 = vadd.f32 %v360, %v367
      %v375 = vadd.f32 %v361, %v372
      %v376 = vtanh.pop %v374
      %v377 = vtanh.pop %v375
      %v378 = vpack.c.bf16 %v376, %v376
      %v379 = vpack.c.bf16 %v377, %v377
      %v380 = vunpack.c.l.bf16 %v378
      %v381 = vunpack.c.l.bf16 %v379
      %v382 = vsub.f32 %v376, %v380
      %v383 = vsub.f32 %v377, %v381
      %v384 = vpack.c.bf16 %v382, %v382
      %v385 = vpack.c.bf16 %v383, %v383
      %v388 = vunpack.c.l.b16 %v378
      %v389 = vunpack.c.l.b16 %v379
      %v390 = vpack.c.b16 %v389, %v388
      %392 = vrot.lane.b32.xlu0 %v390, 127
      %v393 = vpop.permute.xlu0 %392
      %395 = vrot.lane.b32.xlu0 %v390, 126
      %v396 = vpop.permute.xlu0 %395
      %v400 = vunpack.c.l.b16 %v384
      %v401 = vunpack.c.l.b16 %v385
      %v402 = vpack.c.b16 %v401, %v400
      %404 = vrot.lane.b32.xlu0 %v402, 127
      %v405 = vpop.permute.xlu0 %404
      %407 = vrot.lane.b32.xlu0 %v402, 126
      %v408 = vpop.permute.xlu0 %407
      %v410 = vld [vmem:[%s3] sm:$0xff]
      %v411 = vld [vmem:[%s3 + $0x8] sm:$0xff]
      %v412 = vld [vmem:[%s4] sm:$0xff]
      %v413 = vld [vmem:[%s4 + $0x8] sm:$0xff]
      %415 = vset.pattern.permute.xlu0 0
      %416 = vperm.xlu0 %415, %v412
      %v417 = vpop.permute.xlu0 %416
      %420 = vset.pattern.permute.xlu0 0
      %421 = vperm.xlu0 %420, %v413
      %v422 = vpop.permute.xlu0 %421
      %v426 = vunpack.c.l.b16 %v410
      %v427 = vunpack.c.h.b16 %v410
      %v428 = vunpack.c.l.b16 %v411
      %v429 = vunpack.c.h.b16 %v411
      %v430 = vpack.c.b16 %v428, %v426
      %v431 = vpack.c.b16 %v429, %v427
      %vm433 = vcmask 130048
      %v435 = vsel %vm433, %v431, 0
      %437 = vmatpush.bf16.msra.mxu0 %v393
      %438 = vmatpush.bf16.msra.mxu0 %v390
      %439 = vmatpush.bf16.msra.mxu0 %v408
      %440 = vmatpush.bf16.msra.mxu0 %v405
      %441 = vmatpush.bf16.msra.mxu0 %v402
      %442 = vmatpush.bf16.msra.mxu0 %v396
      %443 = vmatpush.bf16.msra.mxu0 %v393
      %444 = vmatpush.bf16.msra.mxu0 %v390
      %445 = vmatmul.bf16.gmra.mxu0 %v430
      %v446 = vpop.f32.mrf.mxu0
      %v447 = vadd.f32 %v417, %v446
      %v448 = vpop.f32.mrf.mxu0
      %v449 = vadd.f32 %v422, %v448
      %450 = vdwg.mxu0
      %451 = vmatpush.bf16.msra.mxu0 0
      %452 = vmatpush.bf16.msra.mxu0 0
      %453 = vmatpush.bf16.msra.mxu0 0
      %454 = vmatpush.bf16.msra.mxu0 0
      %455 = vmatpush.bf16.msra.mxu0 0
      %456 = vmatpush.bf16.msra.mxu0 0
      %457 = vmatpush.bf16.msra.mxu0 0
      %458 = vmatpush.bf16.msra.mxu0 %v396
      %459 = vmatmul.bf16.gmra.mxu0 %v435
      %v460 = vpop.f32.mrf.mxu0
      %v461 = vadd.f32 %v447, %v460
      %v462 = vpop.f32.mrf.mxu0
      %v463 = vadd.f32 %v449, %v462
      %464 = vdwg.mxu0
      %v465 = vtanh.pop %v461
      %v466 = vtanh.pop %v463
      %v467 = vpack.c.bf16 %v465, %v465
      %v468 = vpack.c.bf16 %v466, %v466
      %v469 = vunpack.c.l.bf16 %v467
      %v470 = vunpack.c.l.bf16 %v468
      %v471 = vsub.f32 %v465, %v469
      %v472 = vsub.f32 %v466, %v470
      %v473 = vpack.c.bf16 %v471, %v471
      %v474 = vpack.c.bf16 %v472, %v472
      %v477 = vunpack.c.l.b16 %v467
      %v478 = vunpack.c.l.b16 %v468
      %v479 = vpack.c.b16 %v478, %v477
      %481 = vrot.lane.b32.xlu0 %v479, 127
      %v482 = vpop.permute.xlu0 %481
      %484 = vrot.lane.b32.xlu0 %v479, 126
      %v485 = vpop.permute.xlu0 %484
      %v489 = vunpack.c.l.b16 %v473
      %v490 = vunpack.c.l.b16 %v474
      %v491 = vpack.c.b16 %v490, %v489
      %493 = vrot.lane.b32.xlu0 %v491, 127
      %v494 = vpop.permute.xlu0 %493
      %496 = vrot.lane.b32.xlu0 %v491, 126
      %v497 = vpop.permute.xlu0 %496
      %v499 = vld [vmem:[%s5] sm:$0xff]
      %v500 = vld [vmem:[%s5 + $0x8] sm:$0xff]
      %v501 = vld [vmem:[%s6] sm:$0xff]
      %v502 = vld [vmem:[%s6 + $0x8] sm:$0xff]
      %504 = vset.pattern.permute.xlu0 0
      %505 = vperm.xlu0 %504, %v501
      %v506 = vpop.permute.xlu0 %505
      %509 = vset.pattern.permute.xlu0 0
      %510 = vperm.xlu0 %509, %v502
      %v511 = vpop.permute.xlu0 %510
      %v515 = vunpack.c.l.b16 %v499
      %v516 = vunpack.c.h.b16 %v499
      %v517 = vunpack.c.l.b16 %v500
      %v518 = vunpack.c.h.b16 %v500
      %v519 = vpack.c.b16 %v517, %v515
      %v520 = vpack.c.b16 %v518, %v516
      %v523 = vsel %vm433, %v520, 0
      %525 = vmatpush.bf16.msra.mxu0 %v482
      %526 = vmatpush.bf16.msra.mxu0 %v479
      %527 = vmatpush.bf16.msra.mxu0 %v497
      %528 = vmatpush.bf16.msra.mxu0 %v494
      %529 = vmatpush.bf16.msra.mxu0 %v491
      %530 = vmatpush.bf16.msra.mxu0 %v485
      %531 = vmatpush.bf16.msra.mxu0 %v482
      %532 = vmatpush.bf16.msra.mxu0 %v479
      %533 = vmatmul.bf16.gmra.mxu0 %v519
      %v534 = vpop.f32.mrf.mxu0
      %v535 = vadd.f32 %v506, %v534
      %v536 = vpop.f32.mrf.mxu0
      %v537 = vadd.f32 %v511, %v536
      %538 = vdwg.mxu0
      %539 = vmatpush.bf16.msra.mxu0 0
      %540 = vmatpush.bf16.msra.mxu0 0
      %541 = vmatpush.bf16.msra.mxu0 0
      %542 = vmatpush.bf16.msra.mxu0 0
      %543 = vmatpush.bf16.msra.mxu0 0
      %544 = vmatpush.bf16.msra.mxu0 0
      %545 = vmatpush.bf16.msra.mxu0 0
      %546 = vmatpush.bf16.msra.mxu0 %v485
      %547 = vmatmul.bf16.gmra.mxu0 %v523
      %v548 = vpop.f32.mrf.mxu0
      %v549 = vadd.f32 %v535, %v548
      %v550 = vpop.f32.mrf.mxu0
      %v551 = vadd.f32 %v537, %v550
      %552 = vdwg.mxu0
      %v553 = vtanh.pop %v549
      %v554 = vtanh.pop %v551
      %vm555 = vcmask 80896
      %556 = vst.msk [vmem:[%s292] sm:$0xff] %vm555, %v553
      %557 = vst.msk [vmem:[%s292 + $0x8] sm:$0xff] %vm555, %v554
      %p558 = scmp.lt.s32.totalorder %s22, 1
      %s559 = scalar_select %p558, %s22, 1
      %p560 = scmp.lt.s32.totalorder %s23, 0
      %s561 = scalar_select %p560, %s23, 0
      %s562 = smul.addr %s559, 2
      %s563 = sadd.s32 %s561, %s562
      %s564 = smul.addr %s563, 8
      %s565 = scalar_lea.vmem %s7, %s564
      // Predicated region
      $region49: #{tpu_custom_call.1} parent=47 // pred_check
        %p566 = pneg %p202
      $region50: #{tpu_custom_call.1} parent=47 // pred_check_branch
        %568 = sbr.rel (%p566) target = $region52
      $region51: #{tpu_custom_call.1} parent=47 // pred_region
        _
      $region52: #{tpu_custom_call.1} parent=47 // pred_fallthru
        _
    $region48: #{tpu_custom_call.1} parent=5 // pred_fallthru
      _
    %p569 = scmp.le.s32.totalorder 2, %s13
    // Predicated region
    $region53: #{tpu_custom_call.1} parent=5 // pred_check
      %p570 = pneg %p569
    $region54: #{tpu_custom_call.1} parent=5 // pred_check_branch
      %572 = sbr.rel (%p570) target = $region56
    $region55: #{tpu_custom_call.1} parent=5 // pred_region
      %s573 = ssub.s32 %s13, 2
      // Predicated region
      $region57: #{tpu_custom_call.1} parent=55 // pred_check
        %p574 = pneg %p208
      $region58: #{tpu_custom_call.1} parent=55 // pred_check_branch
        %576 = sbr.rel (%p574) target = $region60
      $region59: #{tpu_custom_call.1} parent=55 // pred_region
        %p577 = scmp.lt.s32.totalorder %s24, 1
        %s578 = scalar_select %p577, %s24, 1
        %p579 = scmp.lt.s32.totalorder %s25, 0
        %s580 = scalar_select %p579, %s25, 0
        %s581 = smul.addr %s578, 2
        %s582 = sadd.s32 %s580, %s581
        %s583 = smul.addr %s582, 8
        %s584 = scalar_lea.vmem %s7, %s583
      $region60: #{tpu_custom_call.1} parent=55 // pred_fallthru
        _
    $region56: #{tpu_custom_call.1} parent=5 // pred_fallthru
      _
  $region6: #{tpu_custom_call.1} parent=0 // loop_footer
    %s17 = sadd.s32 1, %s13
  $region7: #{tpu_custom_call.1} parent=0 // loop_footer_branch
    %12 = sbr.rel target = $region3
  $region8: #{tpu_custom_call.1} parent=0 // loop_exit
    _

</llo_original>
